<compile_context>
chip_gen: v7x
topology: tpu7x:2x2x1
jax: 0.10.0
libtpu: 0.0.40
codegen_flags: <defaults>
</compile_context>

<pallas_src>
import functools

import jax
import jax.numpy as jnp
from jax import lax
from jax.experimental import pallas as pl
from jax.experimental.pallas import tpu as pltpu


# Fixed Sobel taps (match the module's L1 / L2) -- used only by the reference.
_K1 = ((-1.0, 0.0, 1.0), (-2.0, 0.0, 2.0), (-1.0, 0.0, 1.0))  # L1 (Gx)
_K2 = ((1.0, 2.0, 1.0), (0.0, 0.0, 0.0), (-1.0, -2.0, -1.0))  # L2 (Gy)


def _tpu_target():
    """Best-effort (per-core VMEM bytes, #TensorCores to split the batch over)."""
    vmem_cap = 128 * 1024 * 1024          # v5e / v6e physical VMEM per core
    ncore = 1
    try:
        info = pltpu.get_tpu_info()
        vmem_cap = int(getattr(info, "vmem_capacity_bytes", vmem_cap))
    except Exception:
        pass
    kind = ""
    try:
        kind = jax.devices()[0].device_kind.lower()
    except Exception:
        pass
    # v7x: 2 TensorCores per chip, 64 MiB VMEM per TensorCore.  On 1-TC chips
    # keep ncore = 1 so we never pay a duplicated (masked) batch block.
    if ("v7" in kind) or ("7x" in kind) or vmem_cap <= 64 * 1024 * 1024:
        ncore = 2
        vmem_cap = min(vmem_cap, 64 * 1024 * 1024)
    return vmem_cap, ncore


def _contour_kernel(x_ref, y_ref, o1_ref, o2_ref, *,
                    B, tb, nb, C, H, W, apply_row_mask):
    c = pl.program_id(0)
    b = pl.program_id(1)

    @pl.when(b == 0)
    def _():
        o1_ref[...] = jnp.zeros_like(o1_ref)
        o2_ref[...] = jnp.zeros_like(o2_ref)

    HW = H * W
    Lo = HW - 2 * W - 2          # flat "anchor" positions covering all valid outputs

    # Load native-dtype blocks, upcast once, channel-sum the difference image.
    xf = x_ref[...].astype(jnp.float32)          # (tb, C*H*W)
    yf = y_ref[...].astype(jnp.float32)
    df = xf - yf
    d = df[:, 0:HW]
    for ch in range(1, C):
        d = d + df[:, ch * HW:(ch + 1) * HW]     # (tb, H*W)

    if apply_row_mask:
        # Ragged tail / duplicated clamped block: zero rows past the true batch
        # (jnp.where, not multiply, so stale-VMEM NaNs cannot leak through).
        start = (c * nb + b) * tb                # intended global start row
        row = start + lax.broadcasted_iota(jnp.int32, (tb, 1), 0)
        d = jnp.where(row < B, d, 0.0)

    # Separable 3x3 Sobel ('valid' cross-correlation) on the flat layout via
    # static lane-offset slices of common length Lo.
    W2 = 2 * W
    d00 = d[:, 0:Lo]
    d01 = d[:, 1:1 + Lo]
    d02 = d[:, 2:2 + Lo]
    d10 = d[:, W:W + Lo]
    d12 = d[:, W + 2:W + 2 + Lo]
    d20 = d[:, W2:W2 + Lo]
    d21 = d[:, W2 + 1:W2 + 1 + Lo]
    d22 = d[:, W2 + 2:W2 + 2 + Lo]

    g1 = (d02 - d00) + 2.0 * (d12 - d10) + (d22 - d20)         # L1 response
    g2 = (d00 + 2.0 * d01 + d02) - (d20 + 2.0 * d21 + d22)     # L2 response

    # Per-flat-position sums of squares over this block's batch rows.  Positions
    # whose 3x3 window wraps across image rows hold finite garbage; they are
    # masked out on the host side, so the hot loop needs no lane mask and no
    # cross-lane reduction.
    o1_ref[...] += jnp.sum(g1 * g1, axis=0, keepdims=True)
    o2_ref[...] += jnp.sum(g2 * g2, axis=0, keepdims=True)


def c_contour(x, y, *, max_block_batch=1024):
    """Pallas implementation of C_contour.forward(x, y).  x, y: (B, C, H, W)."""
    assert x.shape == y.shape, (x.shape, y.shape)
    B, C, H, W = x.shape
    assert H >= 3 and W >= 3, "3x3 'valid' conv needs H, W >= 3"
    if x.dtype != y.dtype:
        ct = jnp.promote_types(x.dtype, y.dtype)
        x, y = x.astype(ct), y.astype(ct)

    # PyTorch replicates a single channel 3x; the conv is linear, so scale the
    # final scalar instead of tripling HBM traffic with a concat.
    scale = 3.0 if C == 1 else 1.0

    HW, CHW = H * W, C * H * W
    Lo = HW - 2 * W - 2

    # Lane-dense flat view (bitcast for contiguous NCHW -> no extra HBM pass).
    xf = x.reshape(B, CHW)
    yf = y.reshape(B, CHW)

    vmem_cap, ncore = _tpu_target()

    # Size the batch block against generation-specific VMEM:
    #   inputs: 2 arrays x 2 pipeline buffers x native-dtype bytes per image
    #   temps : f32 intermediates (upcast copies, channel-summed diff, 8 shifted
    #           slices, g1/g2, squares) -- conservative allowance.
    itemsize = jnp.dtype(x.dtype).itemsize
    chw_pad = -(-CHW // 128) * 128
    hw_pad = -(-HW // 128) * 128
    in_bytes = 2 * 2 * chw_pad * itemsize
    tmp_bytes = (3 * C + 16) * hw_pad * 4
    budget = min(vmem_cap // 2, 48 * 1024 * 1024)
    tb = max(1, budget // (in_bytes + tmp_bytes))
    tb = int(min(tb, max_block_batch, B))
    if tb < B:
        # Keep the block's sublane dim a multiple of 32 so it is tile-aligned
        # for every input dtype (f32 / bf16 / int8).  (For tiny B, tb == B and
        # the "full array dim" rule applies instead.)
        tb = min(max(32, (tb // 32) * 32), B)

    nblocks = pl.cdiv(B, tb)
    if nblocks < ncore:
        ncore = 1                      # never pay a fully-duplicated block
    nb = pl.cdiv(nblocks, ncore)

    # Ragged tail (B % tb) and the clamped duplicate block on the last core
    # (nblocks % ncore) are neutralized by the in-kernel row mask; skip the
    # mask entirely when neither can occur.
    apply_row_mask = (B % tb != 0) or (nblocks % ncore != 0)

    # Clamp keeps every DMA in bounds; the row mask (based on the *unclamped*
    # start) guarantees duplicated blocks contribute zero.
    in_map = lambda c, b: (jnp.minimum(c * nb + b, nblocks - 1), 0)
    out_map = lambda c, b: (c, 0)

    kernel = functools.partial(_contour_kernel, B=B, tb=tb, nb=nb,
                               C=C, H=H, W=W, apply_row_mask=apply_row_mask)

    out1, out2 = pl.pallas_call(
        kernel,
        out_shape=(jax.ShapeDtypeStruct((ncore, Lo), jnp.float32),
                   jax.ShapeDtypeStruct((ncore, Lo), jnp.float32)),
        grid_spec=pltpu.PrefetchScalarGridSpec(
            num_scalar_prefetch=0,
            grid=(ncore, nb),
            in_specs=[
                pl.BlockSpec((tb, CHW), in_map),
                pl.BlockSpec((tb, CHW), in_map),
            ],
            out_specs=[
                pl.BlockSpec((1, Lo), out_map),
                pl.BlockSpec((1, Lo), out_map),
            ],
        ),
        compiler_params=pltpu.CompilerParams(
            # Core axis "parallel" (v7x megacore; per-core output rows, so no
            # accumulator race).  The batch-block axis carries the resident
            # output accumulator, so it must stay "arbitrary".
            dimension_semantics=("parallel", "arbitrary"),
            vmem_limit_bytes=int(min(vmem_cap * 3 // 4, 100 * 1024 * 1024)),
        ),
    )(xf, yf)

    # Host-side finalize: mask flat positions whose 3x3 window wraps across
    # image rows, reduce, sqrt, and apply the C==1 replication scale.
    col = jnp.arange(Lo, dtype=jnp.int32) % W
    col_mask = (col < (W - 2)).astype(jnp.float32)[None, :]      # (1, Lo)
    ss1 = jnp.sum(out1 * col_mask)
    ss2 = jnp.sum(out2 * col_mask)
    return scale * (jnp.sqrt(ss1) + jnp.sqrt(ss2))


def _reference(x, y):
    """Pure-JAX reference mirroring the PyTorch module (sanity check only)."""
    if x.shape[1] == 1:
        x = jnp.concatenate([x, x, x], axis=1)
    if y.shape[1] == 1:
        y = jnp.concatenate([y, y, y], axis=1)
    x = x.astype(jnp.float32)
    y = y.astype(jnp.float32)
    k1 = jnp.asarray(_K1, jnp.float32)
    k2 = jnp.asarray(_K2, jnp.float32)
    w1 = jnp.broadcast_to(k1, (1, 3, 3, 3))  # OIHW, same kernel per input channel
    w2 = jnp.broadcast_to(k2, (1, 3, 3, 3))
    dn = lax.conv_dimension_numbers(x.shape, w1.shape, ("NCHW", "OIHW", "NCHW"))
    conv = lambda inp, w: lax.conv_general_dilated(inp, w, (1, 1), "VALID",
                                                   dimension_numbers=dn)
    dx1 = conv(x, w1) - conv(y, w1)
    dx2 = conv(x, w2) - conv(y, w2)
    return jnp.sqrt(jnp.sum(dx1 * dx1)) + jnp.sqrt(jnp.sum(dx2 * dx2))


if __name__ == "__main__":
    key = jax.random.PRNGKey(0)
    kx, ky = jax.random.split(key)

    # MNIST-M-like RGB pair.
    B, C, H, W = 8, 3, 28, 28
    x = jax.random.uniform(kx, (B, C, H, W), dtype=jnp.float32)
    y = jax.random.uniform(ky, (B, C, H, W), dtype=jnp.float32)

    out = c_contour(x, y)
    jax.block_until_ready(out)
    ref = _reference(x, y)
    assert jnp.abs(out - ref) / jnp.maximum(jnp.abs(ref), 1.0) < 1e-3, (out, ref)

    # Single-channel (MNIST) path: channel replication handled by linear scaling.
    out1 = c_contour(x[:, :1], y[:, :1])
    jax.block_until_ready(out1)
    ref1 = _reference(x[:, :1], y[:, :1])
    assert jnp.abs(out1 - ref1) / jnp.maximum(jnp.abs(ref1), 1.0) < 1e-3, (out1, ref1)

    # Ragged batch + native bf16 DMA: B is not a multiple of the batch block,
    # so the in-kernel row mask (no jnp.pad) and the native-dtype path are hit.
    Bs, Hs, Ws = 40, 16, 16
    kx2, ky2 = jax.random.split(jax.random.PRNGKey(1))
    x2 = jax.random.uniform(kx2, (Bs, 3, Hs, Ws), dtype=jnp.float32).astype(jnp.bfloat16)
    y2 = jax.random.uniform(ky2, (Bs, 3, Hs, Ws), dtype=jnp.float32).astype(jnp.bfloat16)
    out2 = c_contour(x2, y2, max_block_batch=32)
    jax.block_until_ready(out2)
    ref2 = _reference(x2.astype(jnp.float32), y2.astype(jnp.float32))
    assert jnp.abs(out2 - ref2) / jnp.maximum(jnp.abs(ref2), 1.0) < 1e-2, (out2, ref2)

    print("KERNEL_OK")
</pallas_src>

<mosaic_0001>
module attributes {stable_mosaic.version = 11 : i64} {
  func.func @_contour_kernel(%arg0: i32, %arg1: i32, %arg2: memref<8x2352xf32, #tpu.memory_space<vmem>>, %arg3: memref<8x2352xf32, #tpu.memory_space<vmem>>, %arg4: memref<1x726xf32, #tpu.memory_space<vmem>>, %arg5: memref<1x726xf32, #tpu.memory_space<vmem>>) attributes {dimension_semantics = [#tpu.dimension_semantics<parallel>, #tpu.dimension_semantics<arbitrary>], iteration_bounds = array<i64: 1, 1>, scalar_prefetch = 0 : i64, scratch_operands = 0 : i64, tpu.core_type = #tpu.core_type<tc>, window_params = [{transform_indices = @transform_0, window_bounds = array<i64: 8, 2352>}, {transform_indices = @transform_1, window_bounds = array<i64: 8, 2352>}, {transform_indices = @transform_2, window_bounds = array<i64: 1, 726>}, {transform_indices = @transform_3, window_bounds = array<i64: 1, 726>}]} {
    %c0_i32 = arith.constant 0 : i32
    %0 = arith.cmpi eq, %arg1, %c0_i32 : i32
    %1 = arith.extui %0 : i1 to i32
    %c0_i32_0 = arith.constant 0 : i32
    %2 = arith.cmpi ne, %1, %c0_i32_0 : i32
    scf.if %2 {
      %cst_16 = arith.constant 0.000000e+00 : f32
      %47 = vector.broadcast %cst_16 : f32 to vector<1x726xf32>
      %c0_17 = arith.constant 0 : index
      %c0_18 = arith.constant 0 : index
      %48 = vector.load %arg4[%c0_17, %c0_18] : memref<1x726xf32, #tpu.memory_space<vmem>>, vector<1x726xf32>
      tpu.vector_store %arg4[%c0_17, %c0_18], %47 {strides = array<i32>} : memref<1x726xf32, #tpu.memory_space<vmem>>, vector<1x726xf32>,
      %cst_19 = arith.constant 0.000000e+00 : f32
      %49 = vector.broadcast %cst_19 : f32 to vector<1x726xf32>
      %c0_20 = arith.constant 0 : index
      %c0_21 = arith.constant 0 : index
      %50 = vector.load %arg5[%c0_20, %c0_21] : memref<1x726xf32, #tpu.memory_space<vmem>>, vector<1x726xf32>
      tpu.vector_store %arg5[%c0_20, %c0_21], %49 {strides = array<i32>} : memref<1x726xf32, #tpu.memory_space<vmem>>, vector<1x726xf32>,
    } else {
    }
    %c0 = arith.constant 0 : index
    %c0_1 = arith.constant 0 : index
    %3 = vector.load %arg2[%c0, %c0_1] : memref<8x2352xf32, #tpu.memory_space<vmem>>, vector<8x2352xf32>
    %c0_2 = arith.constant 0 : index
    %c0_3 = arith.constant 0 : index
    %4 = vector.load %arg3[%c0_2, %c0_3] : memref<8x2352xf32, #tpu.memory_space<vmem>>, vector<8x2352xf32>
    %5 = arith.subf %3, %4 : vector<8x2352xf32>
    %6 = vector.extract_strided_slice %5 {offsets = [0, 0], sizes = [8, 784], strides = [1, 1]} : vector<8x2352xf32> to vector<8x784xf32>
    %7 = vector.extract_strided_slice %5 {offsets = [0, 784], sizes = [8, 784], strides = [1, 1]} : vector<8x2352xf32> to vector<8x784xf32>
    %8 = arith.addf %6, %7 : vector<8x784xf32>
    %9 = vector.extract_strided_slice %5 {offsets = [0, 1568], sizes = [8, 784], strides = [1, 1]} : vector<8x2352xf32> to vector<8x784xf32>
    %10 = arith.addf %8, %9 : vector<8x784xf32>
    %11 = vector.extract_strided_slice %10 {offsets = [0, 0], sizes = [8, 726], strides = [1, 1]} : vector<8x784xf32> to vector<8x726xf32>
    %12 = vector.extract_strided_slice %10 {offsets = [0, 1], sizes = [8, 726], strides = [1, 1]} : vector<8x784xf32> to vector<8x726xf32>
    %13 = vector.extract_strided_slice %10 {offsets = [0, 2], sizes = [8, 726], strides = [1, 1]} : vector<8x784xf32> to vector<8x726xf32>
    %14 = vector.extract_strided_slice %10 {offsets = [0, 28], sizes = [8, 726], strides = [1, 1]} : vector<8x784xf32> to vector<8x726xf32>
    %15 = vector.extract_strided_slice %10 {offsets = [0, 30], sizes = [8, 726], strides = [1, 1]} : vector<8x784xf32> to vector<8x726xf32>
    %16 = vector.extract_strided_slice %10 {offsets = [0, 56], sizes = [8, 726], strides = [1, 1]} : vector<8x784xf32> to vector<8x726xf32>
    %17 = vector.extract_strided_slice %10 {offsets = [0, 57], sizes = [8, 726], strides = [1, 1]} : vector<8x784xf32> to vector<8x726xf32>
    %18 = vector.extract_strided_slice %10 {offsets = [0, 58], sizes = [8, 726], strides = [1, 1]} : vector<8x784xf32> to vector<8x726xf32>
    %19 = arith.subf %13, %11 : vector<8x726xf32>
    %20 = arith.subf %15, %14 : vector<8x726xf32>
    %cst = arith.constant 2.000000e+00 : f32
    %21 = vector.broadcast %cst : f32 to vector<8x726xf32>
    %22 = arith.mulf %21, %20 : vector<8x726xf32>
    %23 = arith.addf %19, %22 : vector<8x726xf32>
    %24 = arith.subf %18, %16 : vector<8x726xf32>
    %25 = arith.addf %23, %24 : vector<8x726xf32>
    %cst_4 = arith.constant 2.000000e+00 : f32
    %26 = vector.broadcast %cst_4 : f32 to vector<8x726xf32>
    %27 = arith.mulf %26, %12 : vector<8x726xf32>
    %28 = arith.addf %11, %27 : vector<8x726xf32>
    %29 = arith.addf %28, %13 : vector<8x726xf32>
    %cst_5 = arith.constant 2.000000e+00 : f32
    %30 = vector.broadcast %cst_5 : f32 to vector<8x726xf32>
    %31 = arith.mulf %30, %17 : vector<8x726xf32>
    %32 = arith.addf %16, %31 : vector<8x726xf32>
    %33 = arith.addf %32, %18 : vector<8x726xf32>
    %34 = arith.subf %29, %33 : vector<8x726xf32>
    %c0_6 = arith.constant 0 : index
    %c0_7 = arith.constant 0 : index
    %35 = vector.load %arg4[%c0_6, %c0_7] : memref<1x726xf32, #tpu.memory_space<vmem>>, vector<1x726xf32>
    %36 = arith.mulf %25, %25 : vector<8x726xf32>
    %cst_8 = arith.constant dense<0.000000e+00> : vector<726xf32>
    %37 = vector.multi_reduction <add>, %36, %cst_8 [0] : vector<8x726xf32> to vector<726xf32>
    %38 = vector.shape_cast %37 : vector<726xf32> to vector<1x726xf32>
    %39 = arith.addf %35, %38 : vector<1x726xf32>
    %c0_9 = arith.constant 0 : index
    %c0_10 = arith.constant 0 : index
    %40 = vector.load %arg4[%c0_9, %c0_10] : memref<1x726xf32, #tpu.memory_space<vmem>>, vector<1x726xf32>
    tpu.vector_store %arg4[%c0_9, %c0_10], %39 {strides = array<i32>} : memref<1x726xf32, #tpu.memory_space<vmem>>, vector<1x726xf32>,
    %c0_11 = arith.constant 0 : index
    %c0_12 = arith.constant 0 : index
    %41 = vector.load %arg5[%c0_11, %c0_12] : memref<1x726xf32, #tpu.memory_space<vmem>>, vector<1x726xf32>
    %42 = arith.mulf %34, %34 : vector<8x726xf32>
    %cst_13 = arith.constant dense<0.000000e+00> : vector<726xf32>
    %43 = vector.multi_reduction <add>, %42, %cst_13 [0] : vector<8x726xf32> to vector<726xf32>
    %44 = vector.shape_cast %43 : vector<726xf32> to vector<1x726xf32>
    %45 = arith.addf %41, %44 : vector<1x726xf32>
    %c0_14 = arith.constant 0 : index
    %c0_15 = arith.constant 0 : index
    %46 = vector.load %arg5[%c0_14, %c0_15] : memref<1x726xf32, #tpu.memory_space<vmem>>, vector<1x726xf32>
    tpu.vector_store %arg5[%c0_14, %c0_15], %45 {strides = array<i32>} : memref<1x726xf32, #tpu.memory_space<vmem>>, vector<1x726xf32>,
    return
  }
  func.func @transform_0(%arg0: i32, %arg1: i32) -> (i32, i32) {
    %c1_i32 = arith.constant 1 : i32
    %0 = arith.muli %arg0, %c1_i32 : i32
    %1 = arith.addi %0, %arg1 : i32
    %c0_i32 = arith.constant 0 : i32
    %2 = arith.minsi %1, %c0_i32 : i32
    %c0_i32_0 = arith.constant 0 : i32
    %c0_i32_1 = arith.constant 0 : i32
    return %2, %c0_i32_0 : i32, i32
  }
  func.func @transform_1(%arg0: i32, %arg1: i32) -> (i32, i32) {
    %c1_i32 = arith.constant 1 : i32
    %0 = arith.muli %arg0, %c1_i32 : i32
    %1 = arith.addi %0, %arg1 : i32
    %c0_i32 = arith.constant 0 : i32
    %2 = arith.minsi %1, %c0_i32 : i32
    %c0_i32_0 = arith.constant 0 : i32
    %c0_i32_1 = arith.constant 0 : i32
    return %2, %c0_i32_0 : i32, i32
  }
  func.func @transform_2(%arg0: i32, %arg1: i32) -> (i32, i32) {
    %c0_i32 = arith.constant 0 : i32
    %c0_i32_0 = arith.constant 0 : i32
    return %arg0, %c0_i32 : i32, i32
  }
  func.func @transform_3(%arg0: i32, %arg1: i32) -> (i32, i32) {
    %c0_i32 = arith.constant 0 : i32
    %c0_i32_0 = arith.constant 0 : i32
    return %arg0, %c0_i32 : i32, i32
  }
}

</mosaic_0001>

<llo_original>
// kernel: tpu_custom_call.1
$region0: #{tpu_custom_call.1}
  #allocation0 [shape = 'u32[]', space=smem, size = 0x4, offset = 0x4, fixed_abs, tag = 'smem constant byte address 0x4 - core index']
  #allocation1 [shape = 'u32[144,128]{1,0:T(1,128)}', space=vmem, size = 0x12000, scoped, tag = 'internal scratch']
  %s0 = inlined_call_operand.hbm [shape: f32[8,2352], index: 0, kind: input, shape index: {}]
  %s1 = inlined_call_operand.hbm [shape: f32[8,2352], index: 1, kind: input, shape index: {}]
  %s2 = inlined_call_operand.hbm [shape: f32[1,726], index: 2, kind: output, shape index: {0}]
  %s3 = inlined_call_operand.hbm [shape: f32[1,726], index: 3, kind: output, shape index: {1}]
  %4 = xla_tuple %s2, %s3
  %s5 = sld [smem:[#allocation0]]
  $region38: #{tpu_custom_call.1} parent=0
    _
  %s7 = ssub.s32 1, %s5
  %s8 = scalar_select 0, %s7, %s5
  $region1: #{tpu_custom_call.1} parent=0
    #allocation2 [shape = 'u8[77824]{0}', space=vmem, size = 0x13000, scoped, tag = 'input window, operand 0, single buffered']
    #allocation3 [shape = 's32[1]{0}', space=sflag, size = 0x4, scoped, tag = 'scoped memory for tpu_custom_call.1']
    #allocation4 [shape = 's32[1]{0}', space=sflag, size = 0x4, scoped, tag = 'scoped memory for tpu_custom_call.1']
    #allocation5 [shape = 'u8[77824]{0}', space=vmem, size = 0x13000, scoped, tag = 'input window, operand 1, single buffered']
    #allocation6 [shape = 's32[1]{0}', space=sflag, size = 0x4, scoped, tag = 'scoped memory for tpu_custom_call.1']
    #allocation7 [shape = 'u8[3072]{0}', space=vmem, size = 0xc00, scoped, tag = 'output window, operand 0, single buffered']
    #allocation8 [shape = 'u8[3072]{0}', space=vmem, size = 0xc00, scoped, tag = 'output window, operand 1, single buffered']
    #allocation9 [shape = 's32[1]{0}', space=sflag, size = 0x4, scoped, tag = 'scoped memory for tpu_custom_call.1']
    %9 = vsyncpa [#allocation3], 0
    %10 = vsyncpa [#allocation6], 0
    %11 = vsyncpa [#allocation4], 0
    %12 = vsyncpa [#allocation9], 0
    // Predicated region
    $region2: #{tpu_custom_call.1} parent=1 // pred_check
      _
    $region3: #{tpu_custom_call.1} parent=1 // pred_check_branch
      %14 = sbr.rel (0) target = $region5
    $region4: #{tpu_custom_call.1} parent=1 // pred_region
      %s15 = sadd.s32 0, 0
      %p16 = scmp.lt.s32.totalorder %s15, 0
      %s17 = scalar_select %p16, %s15, 0
      %s19 = ssub.s32 2432, 2432
      %20 = vsyncadd [#allocation3], %s19
      %s21 = smul.addr %s17, 19
      %s22 = smul.addr %s21, 128
      %s23 = scalar_lea.hbm %s0, %s22
      %s25 = sshll.u32 [#allocation2], 4
      %s26 = int_to_ptr.vmem [resolvable:$true] %s25
      %28 = dma.hbm_to_vmem [thread:$0]  %s23, 2432, %s26, [#allocation3]
    $region5: #{tpu_custom_call.1} parent=1 // pred_fallthru
      _
    // Predicated region
    $region6: #{tpu_custom_call.1} parent=1 // pred_check
      _
    $region7: #{tpu_custom_call.1} parent=1 // pred_check_branch
      %30 = sbr.rel (0) target = $region9
    $region8: #{tpu_custom_call.1} parent=1 // pred_region
      %s31 = sadd.s32 0, 0
      %p32 = scmp.lt.s32.totalorder %s31, 0
      %s33 = scalar_select %p32, %s31, 0
      %s35 = ssub.s32 2432, 2432
      %36 = vsyncadd [#allocation6], %s35
      %s37 = smul.addr %s33, 19
      %s38 = smul.addr %s37, 128
      %s39 = scalar_lea.hbm %s1, %s38
      %s41 = sshll.u32 [#allocation5], 4
      %s42 = int_to_ptr.vmem [resolvable:$true] %s41
      %44 = dma.hbm_to_vmem [thread:$0]  %s39, 2432, %s42, [#allocation6]
    $region9: #{tpu_custom_call.1} parent=1 // pred_fallthru
      _
    // Predicated region
    $region10: #{tpu_custom_call.1} parent=1 // pred_check
      _
    $region11: #{tpu_custom_call.1} parent=1 // pred_check_branch
      %46 = sbr.rel (0) target = $region13
    $region12: #{tpu_custom_call.1} parent=1 // pred_region
      %47 = dma.done [#allocation3], 2432
    $region13: #{tpu_custom_call.1} parent=1 // pred_fallthru
      _
    // Predicated region
    $region14: #{tpu_custom_call.1} parent=1 // pred_check
      _
    $region15: #{tpu_custom_call.1} parent=1 // pred_check_branch
      %49 = sbr.rel (0) target = $region17
    $region16: #{tpu_custom_call.1} parent=1 // pred_region
      %50 = dma.done [#allocation6], 2432
    $region17: #{tpu_custom_call.1} parent=1 // pred_fallthru
      _
    %s51 = sadd.s32 0, 0
    %p52 = scmp.lt.s32.totalorder %s51, 0
    %s53 = scalar_select %p52, %s51, 0
    %s54 = sadd.s32 0, 0
    %p55 = scmp.lt.s32.totalorder %s54, 0
    %s56 = scalar_select %p55, %s54, 0
    %p57 = scmp.eq.s32.totalorder 0, 0
    // Predicated region
    $region18: #{tpu_custom_call.1} parent=1 // pred_check
      %p58 = pneg %p57
    $region19: #{tpu_custom_call.1} parent=1 // pred_check_branch
      %60 = sbr.rel (%p58) target = $region21
    $region20: #{tpu_custom_call.1} parent=1 // pred_region
      %v61 = vlaneseq
      %vm62 = vcmp.ge.s32.totalorder %v61, 0
      %vm63 = vcmp.lt.s32.totalorder %v61, 726
      %vm64 = vmand %vm62, %vm63
      %65 = vst.msk [vmem:[#allocation7] sm:$0x3f] %vm64, 0.0
      %66 = vst.msk [vmem:[#allocation8] sm:$0x3f] %vm64, 0.0
    $region21: #{tpu_custom_call.1} parent=1 // pred_fallthru
      _
    %v67 = vld [vmem:[#allocation2] sm:$0xff]
    %v68 = vld [vmem:[#allocation2 + $0x8] sm:$0xff]
    %v69 = vld [vmem:[#allocation2 + $0x10] sm:$0xff]
    %v70 = vld [vmem:[#allocation2 + $0x18] sm:$0xff]
    %v71 = vld [vmem:[#allocation2 + $0x20] sm:$0xff]
    %v72 = vld [vmem:[#allocation2 + $0x28] sm:$0xff]
    %v73 = vld [vmem:[#allocation2 + $0x30] sm:$0xff]
    %v74 = vld [vmem:[#allocation2 + $0x38] sm:$0xff]
    %v75 = vld [vmem:[#allocation2 + $0x40] sm:$0xff]
    %v76 = vld [vmem:[#allocation2 + $0x48] sm:$0xff]
    %v77 = vld [vmem:[#allocation2 + $0x50] sm:$0xff]
    %v78 = vld [vmem:[#allocation2 + $0x58] sm:$0xff]
    %v79 = vld [vmem:[#allocation2 + $0x60] sm:$0xff]
    %v80 = vld [vmem:[#allocation2 + $0x68] sm:$0xff]
    %v81 = vld [vmem:[#allocation2 + $0x70] sm:$0xff]
    %v82 = vld [vmem:[#allocation2 + $0x78] sm:$0xff]
    %v83 = vld [vmem:[#allocation2 + $0x80] sm:$0xff]
    %v84 = vld [vmem:[#allocation2 + $0x88] sm:$0xff]
    %v85 = vld [vmem:[#allocation2 + $0x90] sm:$0xff]
    %v86 = vld [vmem:[#allocation5] sm:$0xff]
    %v87 = vld [vmem:[#allocation5 + $0x8] sm:$0xff]
    %v88 = vld [vmem:[#allocation5 + $0x10] sm:$0xff]
    %v89 = vld [vmem:[#allocation5 + $0x18] sm:$0xff]
    %v90 = vld [vmem:[#allocation5 + $0x20] sm:$0xff]
    %v91 = vld [vmem:[#allocation5 + $0x28] sm:$0xff]
    %v92 = vld [vmem:[#allocation5 + $0x30] sm:$0xff]
    %v93 = vld [vmem:[#allocation5 + $0x38] sm:$0xff]
    %v94 = vld [vmem:[#allocation5 + $0x40] sm:$0xff]
    %v95 = vld [vmem:[#allocation5 + $0x48] sm:$0xff]
    %v96 = vld [vmem:[#allocation5 + $0x50] sm:$0xff]
    %v97 = vld [vmem:[#allocation5 + $0x58] sm:$0xff]
    %v98 = vld [vmem:[#allocation5 + $0x60] sm:$0xff]
    %v99 = vld [vmem:[#allocation5 + $0x68] sm:$0xff]
    %v100 = vld [vmem:[#allocation5 + $0x70] sm:$0xff]
    %v101 = vld [vmem:[#allocation5 + $0x78] sm:$0xff]
    %v102 = vld [vmem:[#allocation5 + $0x80] sm:$0xff]
    %v103 = vld [vmem:[#allocation5 + $0x88] sm:$0xff]
    %v104 = vld [vmem:[#allocation5 + $0x90] sm:$0xff]
    %v105 = vsub.f32 %v67, %v86
    %v106 = vsub.f32 %v68, %v87
    %v107 = vsub.f32 %v69, %v88
    %v108 = vsub.f32 %v70, %v89
    %v109 = vsub.f32 %v71, %v90
    %v110 = vsub.f32 %v72, %v91
    %v111 = vsub.f32 %v73, %v92
    %v112 = vsub.f32 %v74, %v93
    %v113 = vsub.f32 %v75, %v94
    %v114 = vsub.f32 %v76, %v95
    %v115 = vsub.f32 %v77, %v96
    %v116 = vsub.f32 %v78, %v97
    %v117 = vsub.f32 %v79, %v98
    %v118 = vsub.f32 %v80, %v99
    %v119 = vsub.f32 %v81, %v100
    %v120 = vsub.f32 %v82, %v101
    %v121 = vsub.f32 %v83, %v102
    %v122 = vsub.f32 %v84, %v103
    %v123 = vsub.f32 %v85, %v104
    %131 = vrot.lane.b32.xlu0 %v111, 112
    %v132 = vpop.permute.xlu0 %131
    %133 = vrot.lane.b32.xlu0 %v112, 112
    %v134 = vpop.permute.xlu0 %133
    %135 = vrot.lane.b32.xlu0 %v113, 112
    %v136 = vpop.permute.xlu0 %135
    %137 = vrot.lane.b32.xlu0 %v114, 112
    %v138 = vpop.permute.xlu0 %137
    %139 = vrot.lane.b32.xlu0 %v115, 112
    %v140 = vpop.permute.xlu0 %139
    %141 = vrot.lane.b32.xlu0 %v116, 112
    %v142 = vpop.permute.xlu0 %141
    %143 = vrot.lane.b32.xlu0 %v117, 112
    %v144 = vpop.permute.xlu0 %143
    %vm145 = vcmask 916480
    %v146 = vsel %vm145, %v132, %v134
    %v147 = vsel %vm145, %v134, %v136
    %v148 = vsel %vm145, %v136, %v138
    %v149 = vsel %vm145, %v138, %v140
    %v150 = vsel %vm145, %v140, %v142
    %v151 = vsel %vm145, %v142, %v144
    %v159 = vadd.f32 %v105, %v146
    %v160 = vadd.f32 %v106, %v147
    %v161 = vadd.f32 %v107, %v148
    %v162 = vadd.f32 %v108, %v149
    %v163 = vadd.f32 %v109, %v150
    %v164 = vadd.f32 %v110, %v151
    %v165 = vadd.f32 %v111, %v144
    %172 = vrot.lane.b32.xlu0 %v117, 96
    %v173 = vpop.permute.xlu0 %172
    %174 = vrot.lane.b32.xlu0 %v118, 96
    %v175 = vpop.permute.xlu0 %174
    %176 = vrot.lane.b32.xlu0 %v119, 96
    %v177 = vpop.permute.xlu0 %176
    %178 = vrot.lane.b32.xlu0 %v120, 96
    %v179 = vpop.permute.xlu0 %178
    %180 = vrot.lane.b32.xlu0 %v121, 96
    %v181 = vpop.permute.xlu0 %180
    %182 = vrot.lane.b32.xlu0 %v122, 96
    %v183 = vpop.permute.xlu0 %182
    %184 = vrot.lane.b32.xlu0 %v123, 96
    %v185 = vpop.permute.xlu0 %184
    %vm186 = vcmask 785408
    %v187 = vsel %vm186, %v173, %v175
    %v188 = vsel %vm186, %v175, %v177
    %v189 = vsel %vm186, %v177, %v179
    %v190 = vsel %vm186, %v179, %v181
    %v191 = vsel %vm186, %v181, %v183
    %v192 = vsel %vm186, %v183, %v185
    %v200 = vadd.f32 %v159, %v187
    %v201 = vadd.f32 %v160, %v188
    %v202 = vadd.f32 %v161, %v189
    %v203 = vadd.f32 %v162, %v190
    %v204 = vadd.f32 %v163, %v191
    %v205 = vadd.f32 %v164, %v192
    %v206 = vadd.f32 %v165, %v185
    %213 = vrot.lane.b32.xlu0 %v200, 2
    %v214 = vpop.permute.xlu0 %213
    %215 = vrot.lane.b32.xlu0 %v201, 2
    %v216 = vpop.permute.xlu0 %215
    %217 = vrot.lane.b32.xlu0 %v202, 2
    %v218 = vpop.permute.xlu0 %217
    %219 = vrot.lane.b32.xlu0 %v203, 2
    %v220 = vpop.permute.xlu0 %219
    %221 = vrot.lane.b32.xlu0 %v204, 2
    %v222 = vpop.permute.xlu0 %221
    %223 = vrot.lane.b32.xlu0 %v205, 2
    %v224 = vpop.permute.xlu0 %223
    %vm225 = vcmask 15360
    %v226 = vsel %vm225, %v214, %v216
    %v227 = vsel %vm225, %v216, %v218
    %v228 = vsel %vm225, %v218, %v220
    %v229 = vsel %vm225, %v220, %v222
    %v230 = vsel %vm225, %v222, %v224
    %v237 = vsub.f32 %v200, %v214
    %v238 = vsub.f32 %v201, %v226
    %v239 = vsub.f32 %v202, %v227
    %v240 = vsub.f32 %v203, %v228
    %v241 = vsub.f32 %v204, %v229
    %v242 = vsub.f32 %v205, %v230
    %v243 = vmul.f32 %v237, 2.0
    %v244 = vmul.f32 %v238, 2.0
    %v245 = vmul.f32 %v239, 2.0
    %v246 = vmul.f32 %v240, 2.0
    %v247 = vmul.f32 %v241, 2.0
    %v248 = vmul.f32 %v242, 2.0
    %255 = vrot.lane.b32.xlu0 %v243, 100
    %v256 = vpop.permute.xlu0 %255
    %257 = vrot.lane.b32.xlu0 %v244, 100
    %v258 = vpop.permute.xlu0 %257
    %259 = vrot.lane.b32.xlu0 %v245, 100
    %v260 = vpop.permute.xlu0 %259
    %261 = vrot.lane.b32.xlu0 %v246, 100
    %v262 = vpop.permute.xlu0 %261
    %263 = vrot.lane.b32.xlu0 %v247, 100
    %v264 = vpop.permute.xlu0 %263
    %265 = vrot.lane.b32.xlu0 %v248, 100
    %v266 = vpop.permute.xlu0 %265
    %vm267 = vcmask 818176
    %v268 = vsel %vm267, %v256, %v258
    %v269 = vsel %vm267, %v258, %v260
    %v270 = vsel %vm267, %v260, %v262
    %v271 = vsel %vm267, %v262, %v264
    %v272 = vsel %vm267, %v264, %v266
    %v279 = vadd.f32 %v237, %v268
    %v280 = vadd.f32 %v238, %v269
    %v281 = vadd.f32 %v239, %v270
    %v282 = vadd.f32 %v240, %v271
    %v283 = vadd.f32 %v241, %v272
    %v284 = vadd.f32 %v242, %v266
    %286 = vrot.lane.b32.xlu0 %v206, 2
    %v287 = vpop.permute.xlu0 %286
    %v288 = vsel %vm225, %v224, %v287
    %v290 = vsub.f32 %v206, %v288
    %298 = vrot.lane.b32.xlu0 %v237, 72
    %v299 = vpop.permute.xlu0 %298
    %300 = vrot.lane.b32.xlu0 %v238, 72
    %v301 = vpop.permute.xlu0 %300
    %302 = vrot.lane.b32.xlu0 %v239, 72
    %v303 = vpop.permute.xlu0 %302
    %304 = vrot.lane.b32.xlu0 %v240, 72
    %v305 = vpop.permute.xlu0 %304
    %306 = vrot.lane.b32.xlu0 %v241, 72
    %v307 = vpop.permute.xlu0 %306
    %308 = vrot.lane.b32.xlu0 %v242, 72
    %v309 = vpop.permute.xlu0 %308
    %310 = vrot.lane.b32.xlu0 %v290, 72
    %v311 = vpop.permute.xlu0 %310
    %vm312 = vcmask 588800
    %v313 = vsel %vm312, %v299, %v301
    %v314 = vsel %vm312, %v301, %v303
    %v315 = vsel %vm312, %v303, %v305
    %v316 = vsel %vm312, %v305, %v307
    %v317 = vsel %vm312, %v307, %v309
    %v318 = vsel %vm312, %v309, %v311
    %v325 = vadd.f32 %v279, %v313
    %v326 = vadd.f32 %v280, %v314
    %v327 = vadd.f32 %v281, %v315
    %v328 = vadd.f32 %v282, %v316
    %v329 = vadd.f32 %v283, %v317
    %v330 = vadd.f32 %v284, %v318
    %v331 = vmul.f32 %v200, 2.0
    %v332 = vmul.f32 %v201, 2.0
    %v333 = vmul.f32 %v202, 2.0
    %v334 = vmul.f32 %v203, 2.0
    %v335 = vmul.f32 %v204, 2.0
    %v336 = vmul.f32 %v205, 2.0
    %343 = vrot.lane.b32.xlu0 %v331, 127
    %v344 = vpop.permute.xlu0 %343
    %345 = vrot.lane.b32.xlu0 %v332, 127
    %v346 = vpop.permute.xlu0 %345
    %347 = vrot.lane.b32.xlu0 %v333, 127
    %v348 = vpop.permute.xlu0 %347
    %349 = vrot.lane.b32.xlu0 %v334, 127
    %v350 = vpop.permute.xlu0 %349
    %351 = vrot.lane.b32.xlu0 %v335, 127
    %v352 = vpop.permute.xlu0 %351
    %353 = vrot.lane.b32.xlu0 %v336, 127
    %v354 = vpop.permute.xlu0 %353
    %vm355 = vcmask 1039360
    %v356 = vsel %vm355, %v344, %v346
    %v357 = vsel %vm355, %v346, %v348
    %v358 = vsel %vm355, %v348, %v350
    %v359 = vsel %vm355, %v350, %v352
    %v360 = vsel %vm355, %v352, %v354
    %v367 = vadd.f32 %v200, %v356
    %v368 = vadd.f32 %v201, %v357
    %v369 = vadd.f32 %v202, %v358
    %v370 = vadd.f32 %v203, %v359
    %v371 = vadd.f32 %v204, %v360
    %v372 = vadd.f32 %v205, %v354
    %373 = vrot.lane.b32.xlu0 %v200, 126
    %v374 = vpop.permute.xlu0 %373
    %375 = vrot.lane.b32.xlu0 %v201, 126
    %v376 = vpop.permute.xlu0 %375
    %377 = vrot.lane.b32.xlu0 %v202, 126
    %v378 = vpop.permute.xlu0 %377
    %379 = vrot.lane.b32.xlu0 %v203, 126
    %v380 = vpop.permute.xlu0 %379
    %381 = vrot.lane.b32.xlu0 %v204, 126
    %v382 = vpop.permute.xlu0 %381
    %383 = vrot.lane.b32.xlu0 %v205, 126
    %v384 = vpop.permute.xlu0 %383
    %vm385 = vcmask 1031168
    %v386 = vsel %vm385, %v374, %v376
    %v387 = vsel %vm385, %v376, %v378
    %v388 = vsel %vm385, %v378, %v380
    %v389 = vsel %vm385, %v380, %v382
    %v390 = vsel %vm385, %v382, %v384
    %v397 = vadd.f32 %v367, %v386
    %v398 = vadd.f32 %v368, %v387
    %v399 = vadd.f32 %v369, %v388
    %v400 = vadd.f32 %v370, %v389
    %v401 = vadd.f32 %v371, %v390
    %v402 = vadd.f32 %v372, %v384
    %v403 = vmul.f32 %v206, 2.0
    %405 = vrot.lane.b32.xlu0 %v403, 127
    %v406 = vpop.permute.xlu0 %405
    %v407 = vsel %vm355, %v354, %v406
    %v410 = vadd.f32 %v205, %v407
    %v411 = vadd.f32 %v206, %v406
    %412 = vrot.lane.b32.xlu0 %v206, 126
    %v413 = vpop.permute.xlu0 %412
    %v414 = vsel %vm385, %v384, %v413
    %v417 = vadd.f32 %v410, %v414
    %v418 = vadd.f32 %v411, %v413
    %426 = vrot.lane.b32.xlu0 %v397, 72
    %v427 = vpop.permute.xlu0 %426
    %428 = vrot.lane.b32.xlu0 %v398, 72
    %v429 = vpop.permute.xlu0 %428
    %430 = vrot.lane.b32.xlu0 %v399, 72
    %v431 = vpop.permute.xlu0 %430
    %432 = vrot.lane.b32.xlu0 %v400, 72
    %v433 = vpop.permute.xlu0 %432
    %434 = vrot.lane.b32.xlu0 %v401, 72
    %v435 = vpop.permute.xlu0 %434
    %436 = vrot.lane.b32.xlu0 %v417, 72
    %v437 = vpop.permute.xlu0 %436
    %438 = vrot.lane.b32.xlu0 %v418, 72
    %v439 = vpop.permute.xlu0 %438
    %v440 = vsel %vm312, %v427, %v429
    %v441 = vsel %vm312, %v429, %v431
    %v442 = vsel %vm312, %v431, %v433
    %v443 = vsel %vm312, %v433, %v435
    %v444 = vsel %vm312, %v435, %v437
    %v445 = vsel %vm312, %v437, %v439
    %v452 = vsub.f32 %v397, %v440
    %v453 = vsub.f32 %v398, %v441
    %v454 = vsub.f32 %v399, %v442
    %v455 = vsub.f32 %v400, %v443
    %v456 = vsub.f32 %v401, %v444
    %v457 = vsub.f32 %v402, %v445
    %v458 = vld [vmem:[#allocation7] sm:$0x3f]
    %v459 = vmul.f32 %v325, %v325
    %v460 = vmul.f32 %v326, %v326
    %v461 = vmul.f32 %v327, %v327
    %v462 = vmul.f32 %v328, %v328
    %v463 = vmul.f32 %v329, %v329
    %v464 = vmul.f32 %v330, %v330
    %vm465 = vcmask 1047568
    %v466 = vsel %vm465, %v459, 0.0
    %v467 = vrot.slane %v466, 4
    %v468 = vadd.f32 %v466, %v467
    %v469 = vrot.slane %v468, 2
    %v470 = vadd.f32 %v468, %v469
    %v471 = vrot.slane %v470, 1
    %v472 = vadd.f32 %v470, %v471
    %v473 = vrot.slane %v460, 4
    %v474 = vadd.f32 %v460, %v473
    %v475 = vrot.slane %v474, 2
    %v476 = vadd.f32 %v474, %v475
    %v477 = vrot.slane %v476, 1
    %v478 = vadd.f32 %v476, %v477
    %v479 = vrot.slane %v461, 4
    %v480 = vadd.f32 %v461, %v479
    %v481 = vrot.slane %v480, 2
    %v482 = vadd.f32 %v480, %v481
    %v483 = vrot.slane %v482, 1
    %v484 = vadd.f32 %v482, %v483
    %v485 = vrot.slane %v462, 4
    %v486 = vadd.f32 %v462, %v485
    %v487 = vrot.slane %v486, 2
    %v488 = vadd.f32 %v486, %v487
    %v489 = vrot.slane %v488, 1
    %v490 = vadd.f32 %v488, %v489
    %v491 = vrot.slane %v463, 4
    %v492 = vadd.f32 %v463, %v491
    %v493 = vrot.slane %v492, 2
    %v494 = vadd.f32 %v492, %v493
    %v495 = vrot.slane %v494, 1
    %v496 = vadd.f32 %v494, %v495
    %vm497 = vcmask 719872
    %v498 = vsel %vm497, %v464, 0.0
    %v499 = vrot.slane %v498, 4
    %v500 = vadd.f32 %v498, %v499
    %v501 = vrot.slane %v500, 2
    %v502 = vadd.f32 %v500, %v501
    %v503 = vrot.slane %v502, 1
    %v504 = vadd.f32 %v502, %v503
    %v511 = vcombine.low %v472, %v478
    %v512 = vcombine.low %v484, %v490
    %v513 = vcombine.low %v496, %v504
    %v515 = vunpack.c.l.s4 1966171168
    %v516 = vunpack.c.0.s8 %v515
    %v517 = vlaneseq
    %v518 = vshrl.u32 %v517, 7
    %v519 = vsub.s32 %v516, %v518
    %v520 = vrot.slane %v511, %v519
    %v522 = vunpack.c.l.s4 1966171168
    %v523 = vunpack.c.0.s8 %v522
    %v524 = vlaneseq
    %v525 = vshrl.u32 %v524, 7
    %v526 = vsub.s32 %v523, %v525
    %v527 = vrot.slane %v512, %v526
    %v529 = vunpack.c.l.s4 1966171168
    %v530 = vunpack.c.0.s8 %v529
    %v531 = vlaneseq
    %v532 = vshrl.u32 %v531, 7
    %v533 = vsub.s32 %v530, %v532
    %v534 = vrot.slane %v513, %v533
    %v535 = vcombine.low %v520, %v527
    %v537 = vunpack.c.l.s4 1966171168
    %v538 = vunpack.c.0.s8 %v537
    %v539 = vlaneseq
    %v540 = vshrl.u32 %v539, 7
    %v541 = vsub.s32 %v538, %v540
    %v542 = vrot.slane %v535, %v541
    %v544 = vunpack.c.l.s4 1966171168
    %v545 = vunpack.c.0.s8 %v544
    %v546 = vlaneseq
    %v547 = vshrl.u32 %v546, 7
    %v548 = vsub.s32 %v545, %v547
    %v549 = vrot.slane %v534, %v548
    %v550 = vcombine.low %v542, %v549
    %551 = vrot.lane.b32.xlu0 %v550, 126
    %v552 = vpop.permute.xlu0 %551
    %v553 = vrot.slane %v552, 1
    %v554 = vsel %vm385, %v552, %v553
    %v556 = vadd.f32 %v458, %v554
    %v557 = vlaneseq
    %vm558 = vcmp.ge.s32.totalorder %v557, 0
    %vm559 = vcmp.lt.s32.totalorder %v557, 726
    %vm560 = vmand %vm558, %vm559
    %561 = vst.msk [vmem:[#allocation7] sm:$0x3f] %vm560, %v556
    %v562 = vld [vmem:[#allocation8] sm:$0x3f]
    %v563 = vmul.f32 %v452, %v452
    %v564 = vmul.f32 %v453, %v453
    %v565 = vmul.f32 %v454, %v454
    %v566 = vmul.f32 %v455, %v455
    %v567 = vmul.f32 %v456, %v456
    %v568 = vmul.f32 %v457, %v457
    %v569 = vrot.slane %v563, 4
    %v570 = vadd.f32 %v563, %v569
    %v571 = vrot.slane %v570, 2
    %v572 = vadd.f32 %v570, %v571
    %v573 = vrot.slane %v572, 1
    %v574 = vadd.f32 %v572, %v573
    %v575 = vrot.slane %v564, 4
    %v576 = vadd.f32 %v564, %v575
    %v577 = vrot.slane %v576, 2
    %v578 = vadd.f32 %v576, %v577
    %v579 = vrot.slane %v578, 1
    %v580 = vadd.f32 %v578, %v579
    %v581 = vrot.slane %v565, 4
    %v582 = vadd.f32 %v565, %v581
    %v583 = vrot.slane %v582, 2
    %v584 = vadd.f32 %v582, %v583
    %v585 = vrot.slane %v584, 1
    %v586 = vadd.f32 %v584, %v585
    %v587 = vrot.slane %v566, 4
    %v588 = vadd.f32 %v566, %v587
    %v589 = vrot.slane %v588, 2
    %v590 = vadd.f32 %v588, %v589
    %v591 = vrot.slane %v590, 1
    %v592 = vadd.f32 %v590, %v591
    %v593 = vrot.slane %v567, 4
    %v594 = vadd.f32 %v567, %v593
    %v595 = vrot.slane %v594, 2
    %v596 = vadd.f32 %v594, %v595
    %v597 = vrot.slane %v596, 1
    %v598 = vadd.f32 %v596, %v597
    %vm599 = vcmask 703488
    %v600 = vsel %vm599, %v568, 0.0
    %v601 = vrot.slane %v600, 4
    %v602 = vadd.f32 %v600, %v601
    %v603 = vrot.slane %v602, 2
    %v604 = vadd.f32 %v602, %v603
    %v605 = vrot.slane %v604, 1
    %v606 = vadd.f32 %v604, %v605
    %v613 = vcombine.low %v574, %v580
    %v614 = vcombine.low %v586, %v592
    %v615 = vcombine.low %v598, %v606
    %v617 = vunpack.c.l.s4 1966171168
    %v618 = vunpack.c.0.s8 %v617
    %v619 = vlaneseq
    %v620 = vshrl.u32 %v619, 7
    %v621 = vsub.s32 %v618, %v620
    %v622 = vrot.slane %v613, %v621
    %v624 = vunpack.c.l.s4 1966171168
    %v625 = vunpack.c.0.s8 %v624
    %v626 = vlaneseq
    %v627 = vshrl.u32 %v626, 7
    %v628 = vsub.s32 %v625, %v627
    %v629 = vrot.slane %v614, %v628
    %v631 = vunpack.c.l.s4 1966171168
    %v632 = vunpack.c.0.s8 %v631
    %v633 = vlaneseq
    %v634 = vshrl.u32 %v633, 7
    %v635 = vsub.s32 %v632, %v634
    %v636 = vrot.slane %v615, %v635
    %v637 = vcombine.low %v622, %v629
    %v639 = vunpack.c.l.s4 1966171168
    %v640 = vunpack.c.0.s8 %v639
    %v641 = vlaneseq
    %v642 = vshrl.u32 %v641, 7
    %v643 = vsub.s32 %v640, %v642
    %v644 = vrot.slane %v637, %v643
    %v646 = vunpack.c.l.s4 1966171168
    %v647 = vunpack.c.0.s8 %v646
    %v648 = vlaneseq
    %v649 = vshrl.u32 %v648, 7
    %v650 = vsub.s32 %v647, %v649
    %v651 = vrot.slane %v636, %v650
    %v652 = vcombine.low %v644, %v651
    %v654 = vadd.f32 %v562, %v652
    %655 = vst.msk [vmem:[#allocation8] sm:$0x3f] %vm560, %v654
    // Predicated region
    $region22: #{tpu_custom_call.1} parent=1 // pred_check
      _
    $region23: #{tpu_custom_call.1} parent=1 // pred_check_branch
      %657 = sbr.rel (0) target = $region25
    $region24: #{tpu_custom_call.1} parent=1 // pred_region
      %s659 = ssub.s32 96, 96
      %660 = vsyncadd [#allocation4], %s659
      %s662 = sshll.u32 [#allocation7], 4
      %s663 = int_to_ptr.vmem [resolvable:$true] %s662
      %665 = dma.vmem_to_hbm [thread:$0]  %s663, 96, %s2, [#allocation4]
    $region25: #{tpu_custom_call.1} parent=1 // pred_fallthru
      _
    // Predicated region
    $region26: #{tpu_custom_call.1} parent=1 // pred_check
      _
    $region27: #{tpu_custom_call.1} parent=1 // pred_check_branch
      %667 = sbr.rel (0) target = $region29
    $region28: #{tpu_custom_call.1} parent=1 // pred_region
      %s669 = ssub.s32 96, 96
      %670 = vsyncadd [#allocation9], %s669
      %s672 = sshll.u32 [#allocation8], 4
      %s673 = int_to_ptr.vmem [resolvable:$true] %s672
      %675 = dma.vmem_to_hbm [thread:$0]  %s673, 96, %s3, [#allocation9]
    $region29: #{tpu_custom_call.1} parent=1 // pred_fallthru
      _
    // Predicated region
    $region30: #{tpu_custom_call.1} parent=1 // pred_check
      _
    $region31: #{tpu_custom_call.1} parent=1 // pred_check_branch
      %677 = sbr.rel (0) target = $region33
    $region32: #{tpu_custom_call.1} parent=1 // pred_region
      %678 = dma.done [#allocation4], 96
    $region33: #{tpu_custom_call.1} parent=1 // pred_fallthru
      _
    // Predicated region
    $region34: #{tpu_custom_call.1} parent=1 // pred_check
      _
    $region35: #{tpu_custom_call.1} parent=1 // pred_check_branch
      %680 = sbr.rel (0) target = $region37
    $region36: #{tpu_custom_call.1} parent=1 // pred_region
      %681 = dma.done [#allocation9], 96
    $region37: #{tpu_custom_call.1} parent=1 // pred_fallthru
      _
    %682 = vsyncpa [#allocation3], 1
    %683 = vsyncpa [#allocation6], 1
    %684 = vsyncpa [#allocation4], 1
    %685 = vsyncpa [#allocation9], 1

</llo_original>
